<compile_context>
chip_gen: v7x
topology: tpu7x:2x2x1
jax: 0.10.0
libtpu: 0.0.40
codegen_flags: <defaults>
</compile_context>

<pallas_src>
import math
import jax
import jax.numpy as jnp
from jax.experimental import pallas as pl
from jax.experimental.pallas import tpu as pltpu

INPUT_DIM = 121
K_PAD = 128        # fc1 contraction dim padded 121 -> 128
HIDDEN_DIM = 64
LATENT_DIM = 64
N_TARGETS = 2
TILE_M_MAX = 512   # >=512-row tiles ~85% of HBM roofline; multiple of 256 fills v6e/v7x MXU


def _round_up(n, m):
    return ((n + m - 1) // m) * m


def _mlp_kernel(x_ref, w1_ref, b1_ref, w2_ref, b2_ref, w3_ref, b3_ref, o_ref):
    # Fused 3-layer MLP on one (tile_m, 128) row tile.
    # bf16 operands feed the MXU, accumulation is f32, biases are f32.
    x = x_ref[...]                                                        # (tile_m, 128) bf16
    h1 = jnp.dot(x, w1_ref[...], preferred_element_type=jnp.float32) + b1_ref[...]
    h1 = jnp.maximum(h1, 0.0).astype(jnp.bfloat16)
    h2 = jnp.dot(h1, w2_ref[...], preferred_element_type=jnp.float32) + b2_ref[...]
    h2 = jnp.maximum(h2, 0.0).astype(jnp.bfloat16)
    out = jnp.dot(h2, w3_ref[...], preferred_element_type=jnp.float32) + b3_ref[...]
    o_ref[...] = out.astype(o_ref.dtype)


def fully_connected_forward(x, params):
    """x: (B, 121) float32/bf16.  params: dict of w1,b1,w2,b2,w3,b3 in (in_dim, out_dim) layout."""
    B, in_dim = x.shape
    n_targets = params["w3"].shape[1]

    # Batch tile: large tiles for pipelining / MXU fill; multiple of 16 (bf16 sublane pack).
    tile_m = TILE_M_MAX if B >= TILE_M_MAX else _round_up(B, 16)
    b_pad = _round_up(B, tile_m)

    # Layout / dtype prep (outside the kernel): pad K 121->128, pad batch to tile multiple,
    # cast x and weights to bf16.  Biases stay f32 for the f32 accumulators.
    w1p = jnp.pad(params["w1"].astype(jnp.float32),
                  ((0, K_PAD - params["w1"].shape[0]), (0, 0))).astype(jnp.bfloat16)
    w2 = params["w2"].astype(jnp.bfloat16)
    w3 = params["w3"].astype(jnp.bfloat16)
    b1 = params["b1"].astype(jnp.float32)
    b2 = params["b2"].astype(jnp.float32)
    b3 = params["b3"].astype(jnp.float32)
    xp = jnp.pad(x.astype(jnp.bfloat16), ((0, b_pad - B), (0, K_PAD - in_dim)))

    grid = (b_pad // tile_m,)

    # Weights/biases: whole-array blocks with a constant index_map -> VMEM-resident across steps.
    const = lambda arr: pl.BlockSpec(arr.shape, lambda i: (0, 0))

    flops = 2 * b_pad * (K_PAD * HIDDEN_DIM + HIDDEN_DIM * LATENT_DIM + LATENT_DIM * n_targets)
    bytes_accessed = (xp.size * 2                       # bf16 x stream (dominant)
                      + b_pad * n_targets * 4           # f32 out
                      + (w1p.size + w2.size + w3.size) * 2
                      + (b1.size + b2.size + b3.size) * 4)

    out = pl.pallas_call(
        _mlp_kernel,
        out_shape=jax.ShapeDtypeStruct((b_pad, n_targets), jnp.float32),
        grid=grid,
        in_specs=[
            pl.BlockSpec((tile_m, K_PAD), lambda i: (i, 0)),   # streamed, double-buffered
            const(w1p), const(b1),
            const(w2), const(b2),
            const(w3), const(b3),
        ],
        out_specs=pl.BlockSpec((tile_m, n_targets), lambda i: (i, 0)),
        compiler_params=pltpu.CompilerParams(
            dimension_semantics=("parallel",),   # shard batch tiles across both v7x TCs
        ),
        cost_estimate=pl.CostEstimate(
            flops=flops, transcendentals=0, bytes_accessed=bytes_accessed),
    )(xp, w1p, b1, w2, b2, w3, b3)

    return out[:B]


def init_params(key, input_dim=INPUT_DIM, latent_dim=LATENT_DIM,
                n_targets=N_TARGETS, hidden_dim=HIDDEN_DIM):
    """Deterministic init mimicking PyTorch nn.Linear default: U(-1/sqrt(fan_in), 1/sqrt(fan_in))."""
    keys = jax.random.split(key, 6)

    def linear(kw, kb, fan_in, fan_out):
        bound = 1.0 / math.sqrt(fan_in)
        w = jax.random.uniform(kw, (fan_in, fan_out), jnp.float32, -bound, bound)
        b = jax.random.uniform(kb, (1, fan_out), jnp.float32, -bound, bound)
        return w, b

    w1, b1 = linear(keys[0], keys[1], input_dim, hidden_dim)
    w2, b2 = linear(keys[2], keys[3], hidden_dim, latent_dim)
    w3, b3 = linear(keys[4], keys[5], latent_dim, n_targets)
    return {"w1": w1, "b1": b1, "w2": w2, "b2": b2, "w3": w3, "b3": b3}


def reference_forward(x, params):
    h1 = jnp.maximum(x @ params["w1"] + params["b1"], 0.0)
    h2 = jnp.maximum(h1 @ params["w2"] + params["b2"], 0.0)
    return h2 @ params["w3"] + params["b3"]


if __name__ == "__main__":
    key = jax.random.PRNGKey(0)
    k_params, k_x = jax.random.split(key)
    params = init_params(k_params)

    # Small batch plus a batch that is not a multiple of the tile (exercises wrapper padding).
    for batch in (8, 37):
        kx = jax.random.fold_in(k_x, batch)
        x = jax.random.normal(kx, (batch, INPUT_DIM), jnp.float32)

        out = jax.block_until_ready(fully_connected_forward(x, params))
        ref = reference_forward(x, params)

        assert out.shape == (batch, N_TARGETS), out.shape
        # bf16 MXU inputs -> looser tolerance than the pure-f32 reference.
        assert jnp.allclose(out, ref, atol=5e-2, rtol=5e-2), f"mismatch vs reference at B={batch}"

    print("KERNEL_OK")
</pallas_src>

<mosaic_0001>
module attributes {stable_mosaic.version = 11 : i64} {
  func.func @_mlp_kernel(%arg0: i32, %arg1: memref<16x128xbf16, #tpu.memory_space<vmem>>, %arg2: memref<128x64xbf16, #tpu.memory_space<vmem>>, %arg3: memref<1x64xf32, #tpu.memory_space<vmem>>, %arg4: memref<64x64xbf16, #tpu.memory_space<vmem>>, %arg5: memref<1x64xf32, #tpu.memory_space<vmem>>, %arg6: memref<64x2xbf16, #tpu.memory_space<vmem>>, %arg7: memref<1x2xf32, #tpu.memory_space<vmem>>, %arg8: memref<16x2xf32, #tpu.memory_space<vmem>>) attributes {dimension_semantics = [#tpu.dimension_semantics<parallel>], iteration_bounds = array<i64: 1>, scalar_prefetch = 0 : i64, scratch_operands = 0 : i64, tpu.core_type = #tpu.core_type<tc>, window_params = [{transform_indices = @transform_0, window_bounds = array<i64: 16, 128>}, {pipeline_mode = #tpu.pipeline_mode<synchronous>, transform_indices = @transform_1, window_bounds = array<i64: 128, 64>}, {pipeline_mode = #tpu.pipeline_mode<synchronous>, transform_indices = @transform_2, window_bounds = array<i64: 1, 64>}, {pipeline_mode = #tpu.pipeline_mode<synchronous>, transform_indices = @transform_3, window_bounds = array<i64: 64, 64>}, {pipeline_mode = #tpu.pipeline_mode<synchronous>, transform_indices = @transform_4, window_bounds = array<i64: 1, 64>}, {pipeline_mode = #tpu.pipeline_mode<synchronous>, transform_indices = @transform_5, window_bounds = array<i64: 64, 2>}, {pipeline_mode = #tpu.pipeline_mode<synchronous>, transform_indices = @transform_6, window_bounds = array<i64: 1, 2>}, {transform_indices = @transform_7, window_bounds = array<i64: 16, 2>}]} {
    %c0 = arith.constant 0 : index
    %c0_0 = arith.constant 0 : index
    %0 = vector.load %arg1[%c0, %c0_0] : memref<16x128xbf16, #tpu.memory_space<vmem>>, vector<16x128xbf16>
    %c0_1 = arith.constant 0 : index
    %c0_2 = arith.constant 0 : index
    %1 = vector.load %arg2[%c0_1, %c0_2] : memref<128x64xbf16, #tpu.memory_space<vmem>>, vector<128x64xbf16>
    %cst = arith.constant dense<0.000000e+00> : vector<16x64xf32>
    %2 = tpu.matmul %0, %1, %cst {dimension_numbers = #tpu.dot_dimension_numbers<[1], [0], [0], [1], [0, 0, 1, 1], [], []>} : vector<16x128xbf16>, vector<128x64xbf16>, vector<16x64xf32> -> vector<16x64xf32>
    %c0_3 = arith.constant 0 : index
    %c0_4 = arith.constant 0 : index
    %3 = vector.load %arg3[%c0_3, %c0_4] : memref<1x64xf32, #tpu.memory_space<vmem>>, vector<1x64xf32>
    %4 = vector.broadcast %3 : vector<1x64xf32> to vector<16x64xf32>
    %5 = arith.addf %2, %4 : vector<16x64xf32>
    %cst_5 = arith.constant 0.000000e+00 : f32
    %6 = vector.broadcast %cst_5 : f32 to vector<16x64xf32>
    %7 = arith.maximumf %5, %6 : vector<16x64xf32>
    %8 = arith.truncf %7 : vector<16x64xf32> to vector<16x64xbf16>
    %c0_6 = arith.constant 0 : index
    %c0_7 = arith.constant 0 : index
    %9 = vector.load %arg4[%c0_6, %c0_7] : memref<64x64xbf16, #tpu.memory_space<vmem>>, vector<64x64xbf16>
    %cst_8 = arith.constant dense<0.000000e+00> : vector<16x64xf32>
    %10 = tpu.matmul %8, %9, %cst_8 {dimension_numbers = #tpu.dot_dimension_numbers<[1], [0], [0], [1], [0, 0, 1, 1], [], []>} : vector<16x64xbf16>, vector<64x64xbf16>, vector<16x64xf32> -> vector<16x64xf32>
    %c0_9 = arith.constant 0 : index
    %c0_10 = arith.constant 0 : index
    %11 = vector.load %arg5[%c0_9, %c0_10] : memref<1x64xf32, #tpu.memory_space<vmem>>, vector<1x64xf32>
    %12 = vector.broadcast %11 : vector<1x64xf32> to vector<16x64xf32>
    %13 = arith.addf %10, %12 : vector<16x64xf32>
    %cst_11 = arith.constant 0.000000e+00 : f32
    %14 = vector.broadcast %cst_11 : f32 to vector<16x64xf32>
    %15 = arith.maximumf %13, %14 : vector<16x64xf32>
    %16 = arith.truncf %15 : vector<16x64xf32> to vector<16x64xbf16>
    %c0_12 = arith.constant 0 : index
    %c0_13 = arith.constant 0 : index
    %17 = vector.load %arg6[%c0_12, %c0_13] : memref<64x2xbf16, #tpu.memory_space<vmem>>, vector<64x2xbf16>
    %cst_14 = arith.constant dense<0.000000e+00> : vector<16x2xf32>
    %18 = tpu.matmul %16, %17, %cst_14 {dimension_numbers = #tpu.dot_dimension_numbers<[1], [0], [0], [1], [0, 0, 1, 1], [], []>} : vector<16x64xbf16>, vector<64x2xbf16>, vector<16x2xf32> -> vector<16x2xf32>
    %c0_15 = arith.constant 0 : index
    %c0_16 = arith.constant 0 : index
    %19 = vector.load %arg7[%c0_15, %c0_16] : memref<1x2xf32, #tpu.memory_space<vmem>>, vector<1x2xf32>
    %20 = vector.broadcast %19 : vector<1x2xf32> to vector<16x2xf32>
    %21 = arith.addf %18, %20 : vector<16x2xf32>
    %c0_17 = arith.constant 0 : index
    %c0_18 = arith.constant 0 : index
    %22 = vector.load %arg8[%c0_17, %c0_18] : memref<16x2xf32, #tpu.memory_space<vmem>>, vector<16x2xf32>
    tpu.vector_store %arg8[%c0_17, %c0_18], %21 {strides = array<i32>} : memref<16x2xf32, #tpu.memory_space<vmem>>, vector<16x2xf32>,
    return
  }
  func.func @transform_0(%arg0: i32) -> (i32, i32) {
    %c0_i32 = arith.constant 0 : i32
    %c0_i32_0 = arith.constant 0 : i32
    return %arg0, %c0_i32 : i32, i32
  }
  func.func @transform_1(%arg0: i32) -> (i32, i32) {
    %c0_i32 = arith.constant 0 : i32
    %c0_i32_0 = arith.constant 0 : i32
    %c0_i32_1 = arith.constant 0 : i32
    return %c0_i32, %c0_i32_0 : i32, i32
  }
  func.func @transform_2(%arg0: i32) -> (i32, i32) {
    %c0_i32 = arith.constant 0 : i32
    %c0_i32_0 = arith.constant 0 : i32
    %c0_i32_1 = arith.constant 0 : i32
    return %c0_i32, %c0_i32_0 : i32, i32
  }
  func.func @transform_3(%arg0: i32) -> (i32, i32) {
    %c0_i32 = arith.constant 0 : i32
    %c0_i32_0 = arith.constant 0 : i32
    %c0_i32_1 = arith.constant 0 : i32
    return %c0_i32, %c0_i32_0 : i32, i32
  }
  func.func @transform_4(%arg0: i32) -> (i32, i32) {
    %c0_i32 = arith.constant 0 : i32
    %c0_i32_0 = arith.constant 0 : i32
    %c0_i32_1 = arith.constant 0 : i32
    return %c0_i32, %c0_i32_0 : i32, i32
  }
  func.func @transform_5(%arg0: i32) -> (i32, i32) {
    %c0_i32 = arith.constant 0 : i32
    %c0_i32_0 = arith.constant 0 : i32
    %c0_i32_1 = arith.constant 0 : i32
    return %c0_i32, %c0_i32_0 : i32, i32
  }
  func.func @transform_6(%arg0: i32) -> (i32, i32) {
    %c0_i32 = arith.constant 0 : i32
    %c0_i32_0 = arith.constant 0 : i32
    %c0_i32_1 = arith.constant 0 : i32
    return %c0_i32, %c0_i32_0 : i32, i32
  }
  func.func @transform_7(%arg0: i32) -> (i32, i32) {
    %c0_i32 = arith.constant 0 : i32
    %c0_i32_0 = arith.constant 0 : i32
    return %arg0, %c0_i32 : i32, i32
  }
}

</mosaic_0001>

<llo_original>
// kernel: tpu_custom_call.1
$region0: #{tpu_custom_call.1}
  #allocation0 [shape = 'u32[]', space=smem, size = 0x4, offset = 0x4, fixed_abs, tag = 'smem constant byte address 0x4 - core index']
  #allocation1 [shape = 'u32[144,128]{1,0:T(1,128)}', space=vmem, size = 0x12000, scoped, tag = 'internal scratch']
  %s0 = inlined_call_operand.vmem [shape: bf16[16,128], index: 0, kind: input, shape index: {}]
  %s1 = inlined_call_operand.vmem [shape: bf16[128,64], index: 1, kind: input, shape index: {}]
  %s2 = inlined_call_operand.vmem [shape: f32[1,64], index: 2, kind: input, shape index: {}]
  %s3 = inlined_call_operand.vmem [shape: bf16[64,64], index: 3, kind: input, shape index: {}]
  %s4 = inlined_call_operand.vmem [shape: f32[1,64], index: 4, kind: input, shape index: {}]
  %s5 = inlined_call_operand.vmem [shape: bf16[64,2], index: 5, kind: input, shape index: {}]
  %s6 = inlined_call_operand.vmem [shape: f32[1,2], index: 6, kind: input, shape index: {}]
  %s7 = inlined_call_operand.vmem [shape: f32[16,2], index: 7, kind: output, shape index: {}]
  %s8 = sld [smem:[#allocation0]]
  $region38: #{tpu_custom_call.1} parent=0
    _
  %s10 = ssub.s32 1, %s8
  %s11 = scalar_select 0, %s10, %s8
  // Predicated region
  $region2: #{tpu_custom_call.1} parent=0 // pred_check
    _
  $region3: #{tpu_custom_call.1} parent=0 // pred_check_branch
    %13 = sbr.rel (0) target = $region5
  $region4: #{tpu_custom_call.1} parent=0 // pred_region
    _
  $region5: #{tpu_custom_call.1} parent=0 // pred_fallthru
    _
  // Predicated region
  $region6: #{tpu_custom_call.1} parent=0 // pred_check
    _
  $region7: #{tpu_custom_call.1} parent=0 // pred_check_branch
    %15 = sbr.rel (0) target = $region9
  $region8: #{tpu_custom_call.1} parent=0 // pred_region
    _
  $region9: #{tpu_custom_call.1} parent=0 // pred_fallthru
    _
  // Predicated region
  $region10: #{tpu_custom_call.1} parent=0 // pred_check
    _
  $region11: #{tpu_custom_call.1} parent=0 // pred_check_branch
    %17 = sbr.rel (0) target = $region13
  $region12: #{tpu_custom_call.1} parent=0 // pred_region
    _
  $region13: #{tpu_custom_call.1} parent=0 // pred_fallthru
    _
  // Predicated region
  $region14: #{tpu_custom_call.1} parent=0 // pred_check
    _
  $region15: #{tpu_custom_call.1} parent=0 // pred_check_branch
    %19 = sbr.rel (0) target = $region17
  $region16: #{tpu_custom_call.1} parent=0 // pred_region
    _
  $region17: #{tpu_custom_call.1} parent=0 // pred_fallthru
    _
  // Predicated region
  $region18: #{tpu_custom_call.1} parent=0 // pred_check
    _
  $region19: #{tpu_custom_call.1} parent=0 // pred_check_branch
    %21 = sbr.rel (0) target = $region21
  $region20: #{tpu_custom_call.1} parent=0 // pred_region
    _
  $region21: #{tpu_custom_call.1} parent=0 // pred_fallthru
    _
  // Predicated region
  $region22: #{tpu_custom_call.1} parent=0 // pred_check
    _
  $region23: #{tpu_custom_call.1} parent=0 // pred_check_branch
    %23 = sbr.rel (0) target = $region25
  $region24: #{tpu_custom_call.1} parent=0 // pred_region
    _
  $region25: #{tpu_custom_call.1} parent=0 // pred_fallthru
    _
  // Predicated region
  $region26: #{tpu_custom_call.1} parent=0 // pred_check
    _
  $region27: #{tpu_custom_call.1} parent=0 // pred_check_branch
    %25 = sbr.rel (0) target = $region29
  $region28: #{tpu_custom_call.1} parent=0 // pred_region
    _
  $region29: #{tpu_custom_call.1} parent=0 // pred_fallthru
    _
  %v27 = vld [vmem:[%s0] sm:$0xf]
  %v28 = vld [vmem:[%s0 + $0x4] sm:$0xf]
  %v29 = vld [vmem:[%s1] sm:$0xf]
  %v30 = vld [vmem:[%s1 + $0x4] sm:$0xf]
  %v31 = vld [vmem:[%s1 + $0x8] sm:$0xf]
  %v32 = vld [vmem:[%s1 + $0xc] sm:$0xf]
  %v33 = vld [vmem:[%s1 + $0x10] sm:$0xf]
  %v34 = vld [vmem:[%s1 + $0x14] sm:$0xf]
  %v35 = vld [vmem:[%s1 + $0x18] sm:$0xf]
  %v36 = vld [vmem:[%s1 + $0x1c] sm:$0xf]
  %v37 = vld [vmem:[%s1 + $0x20] sm:$0xf]
  %v38 = vld [vmem:[%s1 + $0x24] sm:$0xf]
  %v39 = vld [vmem:[%s1 + $0x28] sm:$0xf]
  %v40 = vld [vmem:[%s1 + $0x2c] sm:$0xf]
  %v41 = vld [vmem:[%s1 + $0x30] sm:$0xf]
  %v42 = vld [vmem:[%s1 + $0x34] sm:$0xf]
  %v43 = vld [vmem:[%s1 + $0x38] sm:$0xf]
  %v44 = vld [vmem:[%s1 + $0x3c] sm:$0xf]
  %v45 = vld [vmem:[%s2] sm:$0x1]
  %v47 = vlaneseq
  %v48 = vshrl.u32 %v47, 7
  %v49 = vsub.s32 0, %v48
  %v50 = vrot.slane %v45, %v49
  %v54 = vunpack.c.l.b16 %v27
  %v55 = vunpack.c.l.b16 %v28
  %v56 = vpack.c.b16 %v55, %v54
  %v74 = vunpack.c.l.b16 %v29
  %v75 = vunpack.c.l.b16 %v30
  %v76 = vunpack.c.l.b16 %v31
  %v77 = vunpack.c.l.b16 %v32
  %v78 = vunpack.c.l.b16 %v33
  %v79 = vunpack.c.l.b16 %v34
  %v80 = vunpack.c.l.b16 %v35
  %v81 = vunpack.c.l.b16 %v36
  %v82 = vunpack.c.l.b16 %v37
  %v83 = vunpack.c.l.b16 %v38
  %v84 = vunpack.c.l.b16 %v39
  %v85 = vunpack.c.l.b16 %v40
  %v86 = vunpack.c.l.b16 %v41
  %v87 = vunpack.c.l.b16 %v42
  %v88 = vunpack.c.l.b16 %v43
  %v89 = vunpack.c.l.b16 %v44
  %v90 = vpack.c.b16 %v75, %v74
  %v91 = vpack.c.b16 %v77, %v76
  %v92 = vpack.c.b16 %v79, %v78
  %v93 = vpack.c.b16 %v81, %v80
  %v94 = vpack.c.b16 %v83, %v82
  %v95 = vpack.c.b16 %v85, %v84
  %v96 = vpack.c.b16 %v87, %v86
  %v97 = vpack.c.b16 %v89, %v88
  %106 = vmatprep.subr.bf16.mxu0 0
  %107 = vmatpush1.bf16.msra.mxu0 %v90
  %108 = vmatprep.subr.bf16.mxu0 0
  %109 = vmatpush1.bf16.msra.mxu0 %v91
  %110 = vmatprep.subr.bf16.mxu0 0
  %111 = vmatpush1.bf16.msra.mxu0 %v92
  %112 = vmatprep.subr.bf16.mxu0 0
  %113 = vmatpush1.bf16.msra.mxu0 %v93
  %114 = vmatprep.subr.bf16.mxu0 0
  %115 = vmatpush1.bf16.msra.mxu0 %v94
  %116 = vmatprep.subr.bf16.mxu0 0
  %117 = vmatpush1.bf16.msra.mxu0 %v95
  %118 = vmatprep.subr.bf16.mxu0 0
  %119 = vmatpush1.bf16.msra.mxu0 %v96
  %120 = vmatprep.subr.bf16.mxu0 0
  %121 = vmatpush1.bf16.msra.mxu0 %v97
  %122 = vmatprep.subr.bf16.mxu0 0
  %123 = vmatpush1.bf16.msra.mxu0 0
  %124 = vmatprep.subr.bf16.mxu0 0
  %125 = vmatpush1.bf16.msra.mxu0 0
  %126 = vmatprep.subr.bf16.mxu0 0
  %127 = vmatpush1.bf16.msra.mxu0 0
  %128 = vmatprep.subr.bf16.mxu0 0
  %129 = vmatpush1.bf16.msra.mxu0 0
  %130 = vmatprep.subr.bf16.mxu0 0
  %131 = vmatpush1.bf16.msra.mxu0 0
  %132 = vmatprep.subr.bf16.mxu0 0
  %133 = vmatpush1.bf16.msra.mxu0 0
  %134 = vmatprep.subr.bf16.mxu0 0
  %135 = vmatpush1.bf16.msra.mxu0 0
  %136 = vmatprep.subr.bf16.mxu0 0
  %137 = vmatpush1.bf16.msra.mxu0 0
  %138 = vmatprep.mubr.bf16.mxu0 0
  %139 = vmatmul.mubr.bf16.gmra.mrb[0].mxu0 %v56
  %v140 = vpop.f32.mrb[0].mxu0
  %v141 = vadd.f32 %v50, %v140
  %v142 = vpop.f32.mrb[0].mxu0
  %v143 = vpop.f32.mrb[0].mxu0
  %v144 = vadd.f32 %v50, %v143
  %v145 = vpop.f32.mrb[0].mxu0
  %146 = vdwg.mxu0
  %v147 = vmax.f32 %v141, 0.0
  %v148 = vmax.f32 %v144, 0.0
  %v149 = vpack.c.bf16 %v148, %v147
  %v150 = vld [vmem:[%s3] sm:$0xf]
  %v151 = vld [vmem:[%s3 + $0x4] sm:$0xf]
  %v152 = vld [vmem:[%s3 + $0x8] sm:$0xf]
  %v153 = vld [vmem:[%s3 + $0xc] sm:$0xf]
  %v154 = vld [vmem:[%s3 + $0x10] sm:$0xf]
  %v155 = vld [vmem:[%s3 + $0x14] sm:$0xf]
  %v156 = vld [vmem:[%s3 + $0x18] sm:$0xf]
  %v157 = vld [vmem:[%s3 + $0x1c] sm:$0xf]
  %v158 = vld [vmem:[%s4] sm:$0x1]
  %v160 = vlaneseq
  %v161 = vshrl.u32 %v160, 7
  %v162 = vsub.s32 0, %v161
  %v163 = vrot.slane %v158, %v162
  %v173 = vunpack.c.l.b16 %v150
  %v174 = vunpack.c.l.b16 %v151
  %v175 = vunpack.c.l.b16 %v152
  %v176 = vunpack.c.l.b16 %v153
  %v177 = vunpack.c.l.b16 %v154
  %v178 = vunpack.c.l.b16 %v155
  %v179 = vunpack.c.l.b16 %v156
  %v180 = vunpack.c.l.b16 %v157
  %v181 = vpack.c.b16 %v174, %v173
  %v182 = vpack.c.b16 %v176, %v175
  %v183 = vpack.c.b16 %v178, %v177
  %v184 = vpack.c.b16 %v180, %v179
  %vm189 = vcmask 523264
  %v191 = vsel %vm189, %v149, 0
  %193 = vmatprep.subr.bf16.mxu0 0
  %194 = vmatpush1.bf16.msra.mxu0 %v181
  %195 = vmatprep.subr.bf16.mxu0 0
  %196 = vmatpush1.bf16.msra.mxu0 %v182
  %197 = vmatprep.subr.bf16.mxu0 0
  %198 = vmatpush1.bf16.msra.mxu0 %v183
  %199 = vmatprep.subr.bf16.mxu0 0
  %200 = vmatpush1.bf16.msra.mxu0 %v184
  %201 = vmatprep.subr.bf16.mxu0 0
  %202 = vmatpush1.bf16.msra.mxu0 0
  %203 = vmatprep.subr.bf16.mxu0 0
  %204 = vmatpush1.bf16.msra.mxu0 0
  %205 = vmatprep.subr.bf16.mxu0 0
  %206 = vmatpush1.bf16.msra.mxu0 0
  %207 = vmatprep.subr.bf16.mxu0 0
  %208 = vmatpush1.bf16.msra.mxu0 0
  %209 = vmatprep.subr.bf16.mxu0 0
  %210 = vmatpush1.bf16.msra.mxu0 0
  %211 = vmatprep.subr.bf16.mxu0 0
  %212 = vmatpush1.bf16.msra.mxu0 0
  %213 = vmatprep.subr.bf16.mxu0 0
  %214 = vmatpush1.bf16.msra.mxu0 0
  %215 = vmatprep.subr.bf16.mxu0 0
  %216 = vmatpush1.bf16.msra.mxu0 0
  %217 = vmatprep.subr.bf16.mxu0 0
  %218 = vmatpush1.bf16.msra.mxu0 0
  %219 = vmatprep.subr.bf16.mxu0 0
  %220 = vmatpush1.bf16.msra.mxu0 0
  %221 = vmatprep.subr.bf16.mxu0 0
  %222 = vmatpush1.bf16.msra.mxu0 0
  %223 = vmatprep.subr.bf16.mxu0 0
  %224 = vmatpush1.bf16.msra.mxu0 0
  %225 = vmatprep.mubr.bf16.mxu0 0
  %226 = vmatmul.mubr.bf16.gmra.mrb[0].mxu0 %v191
  %v227 = vpop.f32.mrb[0].mxu0
  %v228 = vadd.f32 %v163, %v227
  %v229 = vpop.f32.mrb[0].mxu0
  %v230 = vpop.f32.mrb[0].mxu0
  %v231 = vadd.f32 %v163, %v230
  %v232 = vpop.f32.mrb[0].mxu0
  %233 = vdwg.mxu0
  %v234 = vmax.f32 %v228, 0.0
  %v235 = vmax.f32 %v231, 0.0
  %v236 = vpack.c.bf16 %v235, %v234
  %v237 = vld [vmem:[%s5] sm:$0xf]
  %v238 = vld [vmem:[%s5 + $0x4] sm:$0xf]
  %v239 = vld [vmem:[%s5 + $0x8] sm:$0xf]
  %v240 = vld [vmem:[%s5 + $0xc] sm:$0xf]
  %v241 = vld [vmem:[%s5 + $0x10] sm:$0xf]
  %v242 = vld [vmem:[%s5 + $0x14] sm:$0xf]
  %v243 = vld [vmem:[%s5 + $0x18] sm:$0xf]
  %v244 = vld [vmem:[%s5 + $0x1c] sm:$0xf]
  %v245 = vld [vmem:[%s6] sm:$0x1]
  %v247 = vlaneseq
  %v248 = vshrl.u32 %v247, 7
  %v249 = vsub.s32 0, %v248
  %v250 = vrot.slane %v245, %v249
  %v260 = vunpack.c.l.b16 %v237
  %v261 = vunpack.c.l.b16 %v238
  %v262 = vunpack.c.l.b16 %v239
  %v263 = vunpack.c.l.b16 %v240
  %v264 = vunpack.c.l.b16 %v241
  %v265 = vunpack.c.l.b16 %v242
  %v266 = vunpack.c.l.b16 %v243
  %v267 = vunpack.c.l.b16 %v244
  %v268 = vpack.c.b16 %v261, %v260
  %v269 = vpack.c.b16 %v263, %v262
  %v270 = vpack.c.b16 %v265, %v264
  %v271 = vpack.c.b16 %v267, %v266
  %v277 = vsel %vm189, %v236, 0
  %279 = vmatprep.subr.bf16.mxu0 0
  %280 = vmatpush1.bf16.msra.mxu0 %v268
  %281 = vmatprep.subr.bf16.mxu0 0
  %282 = vmatpush1.bf16.msra.mxu0 %v269
  %283 = vmatprep.subr.bf16.mxu0 0
  %284 = vmatpush1.bf16.msra.mxu0 %v270
  %285 = vmatprep.subr.bf16.mxu0 0
  %286 = vmatpush1.bf16.msra.mxu0 %v271
  %287 = vmatprep.subr.bf16.mxu0 0
  %288 = vmatpush1.bf16.msra.mxu0 0
  %289 = vmatprep.subr.bf16.mxu0 0
  %290 = vmatpush1.bf16.msra.mxu0 0
  %291 = vmatprep.subr.bf16.mxu0 0
  %292 = vmatpush1.bf16.msra.mxu0 0
  %293 = vmatprep.subr.bf16.mxu0 0
  %294 = vmatpush1.bf16.msra.mxu0 0
  %295 = vmatprep.subr.bf16.mxu0 0
  %296 = vmatpush1.bf16.msra.mxu0 0
  %297 = vmatprep.subr.bf16.mxu0 0
  %298 = vmatpush1.bf16.msra.mxu0 0
  %299 = vmatprep.subr.bf16.mxu0 0
  %300 = vmatpush1.bf16.msra.mxu0 0
  %301 = vmatprep.subr.bf16.mxu0 0
  %302 = vmatpush1.bf16.msra.mxu0 0
  %303 = vmatprep.subr.bf16.mxu0 0
  %304 = vmatpush1.bf16.msra.mxu0 0
  %305 = vmatprep.subr.bf16.mxu0 0
  %306 = vmatpush1.bf16.msra.mxu0 0
  %307 = vmatprep.subr.bf16.mxu0 0
  %308 = vmatpush1.bf16.msra.mxu0 0
  %309 = vmatprep.subr.bf16.mxu0 0
  %310 = vmatpush1.bf16.msra.mxu0 0
  %311 = vmatprep.mubr.bf16.mxu0 0
  %312 = vmatmul.mubr.bf16.gmra.mrb[0].mxu0 %v277
  %v313 = vpop.f32.mrb[0].mxu0
  %v314 = vadd.f32 %v250, %v313
  %v315 = vpop.f32.mrb[0].mxu0
  %v316 = vpop.f32.mrb[0].mxu0
  %v317 = vadd.f32 %v250, %v316
  %v318 = vpop.f32.mrb[0].mxu0
  %319 = vdwg.mxu0
  %vm320 = vcmask 15360
  %321 = vst.msk [vmem:[%s7] sm:$0xff] %vm320, %v314
  %322 = vst.msk [vmem:[%s7 + $0x8] sm:$0xff] %vm320, %v317
  // Predicated region
  $region30: #{tpu_custom_call.1} parent=0 // pred_check
    _
  $region31: #{tpu_custom_call.1} parent=0 // pred_check_branch
    %324 = sbr.rel (0) target = $region33
  $region32: #{tpu_custom_call.1} parent=0 // pred_region
    _
  $region33: #{tpu_custom_call.1} parent=0 // pred_fallthru
    _
  // Predicated region
  $region34: #{tpu_custom_call.1} parent=0 // pred_check
    _
  $region35: #{tpu_custom_call.1} parent=0 // pred_check_branch
    %326 = sbr.rel (0) target = $region37
  $region36: #{tpu_custom_call.1} parent=0 // pred_region
    _
  $region37: #{tpu_custom_call.1} parent=0 // pred_fallthru
    _

</llo_original>
